<compile_context>
chip_gen: v5e
topology: v5e:2x2
jax: 0.10.0
libtpu: 0.0.40
codegen_flags: <defaults>
</compile_context>

<pallas_src>
import numpy as np
import jax
import jax.numpy as jnp
from jax.experimental import pallas as pl
from jax.experimental.pallas import tpu as pltpu

# ----------------------- small, module-consistent config -----------------------
SEQ = 8                                  # seq_len
BATCH = 2
HIDDEN = 32                              # hidden_size
NUM_HEADS = 2
HEAD_DIM = HIDDEN // NUM_HEADS           # 16
ROT_DIM = HIDDEN // (NUM_HEADS * 2)      # 8   (position_encoding_2d=True)
INNER = 4 * HIDDEN                       # 128 (GLU inner_hidden_size)
NUM_LAYERS = 4
LAYER_ID = 2
LN_EPS = 1e-5
ALPHA = (2.0 * NUM_LAYERS) ** 0.5        # residual scaling
QK_COEFF = float(LAYER_ID + 1)           # query_key_layer_scaling_coeff
ROWS = BATCH * SEQ                       # 16 rows of the flattened activation slab


def _layer_norm(x, w, b, eps):
    mu = jnp.mean(x, axis=-1, keepdims=True)
    var = jnp.mean((x - mu) ** 2, axis=-1, keepdims=True)
    return (x - mu) * jax.lax.rsqrt(var + eps) * w + b


def glm_block_kernel(x_ref, cos_ref, sin_ref, bias_ref,
                     ln1w_ref, ln1b_ref, wqkv_ref, bqkv_ref, wo_ref, bo_ref,
                     ln2w_ref, ln2b_ref, w1_ref, b1_ref, w2_ref, b2_ref,
                     out_ref):
    x = x_ref[...]                        # (ROWS, H), batch-major rows (b*SEQ + s)
    cos_t = cos_ref[...]                  # (ROWS, H)  rotary cos table (both heads)
    sin_t = sin_ref[...]                  # (ROWS, H)  rotary sin table (sign is in R)
    bias = bias_ref[...]                  # (S, S)     additive mask bias (coeff folded in)

    # ---- input layernorm ------------------------------------------------------
    attn_in = _layer_norm(x, ln1w_ref[...], ln1b_ref[...], LN_EPS)

    # ---- fused projection: columns = [Q | K | V | Q@R | K@R] -------------------
    qkv = jnp.dot(attn_in, wqkv_ref[...],
                  preferred_element_type=jnp.float32) + bqkv_ref[...]
    q = qkv[:, 0 * HIDDEN:1 * HIDDEN]
    k = qkv[:, 1 * HIDDEN:2 * HIDDEN]
    v = qkv[:, 2 * HIDDEN:3 * HIDDEN]
    qr = qkv[:, 3 * HIDDEN:4 * HIDDEN]    # rotate_half(q)  (permutation+sign folded into R)
    kr = qkv[:, 4 * HIDDEN:5 * HIDDEN]    # rotate_half(k)

    # ---- 2D rotary (pure elementwise; tables precomputed in the wrapper) -------
    q = q * cos_t + qr * sin_t
    k = k * cos_t + kr * sin_t

    # ---- attention: batched over batch, static unroll over the 2 heads ---------
    q3 = q.reshape(BATCH, SEQ, HIDDEN)
    k3 = k.reshape(BATCH, SEQ, HIDDEN)
    v3 = v.reshape(BATCH, SEQ, HIDDEN)
    wo = wo_ref[...]                      # (H, H), rows in head-major order
    scale = 1.0 / (float(HEAD_DIM) ** 0.5)

    acc = None
    for h in range(NUM_HEADS):            # static unroll (2 iterations)
        sl = slice(h * HEAD_DIM, (h + 1) * HEAD_DIM)
        qh = q3[:, :, sl] * scale          # (B, S, HD)
        kh = k3[:, :, sl]
        vh = v3[:, :, sl]
        # unmasked score = q.k / sqrt(hd); masked entries get -1e4*coeff added
        scores = jnp.einsum('bqd,bkd->bqk', qh, kh,
                            preferred_element_type=jnp.float32) + bias
        smax = jnp.max(scores, axis=-1, keepdims=True)
        p = jnp.exp(scores - smax)
        denom = jnp.sum(p, axis=-1, keepdims=True)
        probs = p * pl.reciprocal(denom, approx=True)
        ctx_h = jnp.einsum('bqk,bkd->bqd', probs, vh,
                           preferred_element_type=jnp.float32)   # (B, S, HD)
        part = jnp.dot(ctx_h.reshape(ROWS, HEAD_DIM), wo[sl, :],
                       preferred_element_type=jnp.float32)       # (ROWS, H)
        acc = part if acc is None else acc + part
    attn_out = acc + bo_ref[...]

    # ---- first alpha residual ---------------------------------------------------
    hidden = attn_in * ALPHA + attn_out

    # ---- post-attention layernorm + GLU (tanh gelu) ------------------------------
    mlp_in = _layer_norm(hidden, ln2w_ref[...], ln2b_ref[...], LN_EPS)
    h4 = jnp.dot(mlp_in, w1_ref[...],
                 preferred_element_type=jnp.float32) + b1_ref[...]
    h4 = 0.5 * h4 * (1.0 + jnp.tanh(0.7978845608028654 * h4 *
                                    (1.0 + 0.044715 * h4 * h4)))
    mlp_out = jnp.dot(h4, w2_ref[...],
                      preferred_element_type=jnp.float32) + b2_ref[...]

    out_ref[...] = mlp_in * ALPHA + mlp_out


# ------------------------------ wrapper-side prep ------------------------------
def _rotate_half_matrix():
    """(H, H) matrix R so that (q @ R) == 2D-rotary rotate_half(q) (sign included)."""
    R = np.zeros((HIDDEN, HIDDEN), np.float32)
    half = ROT_DIM // 2
    for j in range(HIDDEN):
        seg = (j // ROT_DIM) * ROT_DIM
        off = j - seg
        if off < half:
            R[seg + off + half, j] = -1.0      # out[j] = -x[j + half]
        else:
            R[seg + off - half, j] = 1.0       # out[j] = +x[j - half]
    return jnp.asarray(R)


def _relayout_qkv(wqkv, bqkv):
    """Torch-style per-head [q|k|v] grouped (in,out) weights ->
       [Q_all | K_all | V_all | Q_all@R | K_all@R] augmented projection."""
    R = _rotate_half_matrix()
    w4 = wqkv.reshape(HIDDEN, NUM_HEADS, 3, HEAD_DIM)
    b4 = bqkv.reshape(1, NUM_HEADS, 3, HEAD_DIM)
    wq = w4[:, :, 0, :].reshape(HIDDEN, HIDDEN)
    wk = w4[:, :, 1, :].reshape(HIDDEN, HIDDEN)
    wv = w4[:, :, 2, :].reshape(HIDDEN, HIDDEN)
    bq = b4[:, :, 0, :].reshape(1, HIDDEN)
    bk = b4[:, :, 1, :].reshape(1, HIDDEN)
    bv = b4[:, :, 2, :].reshape(1, HIDDEN)
    w_aug = jnp.concatenate([wq, wk, wv, wq @ R, wk @ R], axis=1)   # (H, 5H)
    b_aug = jnp.concatenate([bq, bk, bv, bq @ R, bk @ R], axis=1)   # (1, 5H)
    return w_aug, b_aug


def _make_rotary_tables(position_ids):
    """cos/sin tables of shape (ROWS, H), batch-major rows; per-row layout
       [cos1(8)|cos2(8)] tiled across heads (cos1: token positions, cos2: block positions)."""
    inv_freq = jnp.asarray(
        1.0 / (10000.0 ** (np.arange(0, ROT_DIM, 2, dtype=np.float32) / ROT_DIM)))

    def tab(p):                                              # p: (B, S) int
        ang = p.astype(jnp.float32)[..., None] * inv_freq    # (B, S, ROT_DIM//2)
        emb = jnp.concatenate([ang, ang], axis=-1)           # (B, S, ROT_DIM)
        return jnp.cos(emb), jnp.sin(emb)

    cos1, sin1 = tab(position_ids[:, 0, :])
    cos2, sin2 = tab(position_ids[:, 1, :])
    cos_head = jnp.concatenate([cos1, cos2], axis=-1)        # (B, S, HEAD_DIM)
    sin_head = jnp.concatenate([sin1, sin2], axis=-1)
    cos_full = jnp.concatenate([cos_head] * NUM_HEADS, axis=-1).reshape(ROWS, HIDDEN)
    sin_full = jnp.concatenate([sin_head] * NUM_HEADS, axis=-1).reshape(ROWS, HIDDEN)
    return cos_full, sin_full


def glm_block_forward(hidden_states, position_ids, attention_mask, params):
    """hidden_states: [seq_len, batch, hidden] (PyTorch layout)
       position_ids:  [batch, 2, seq_len] int32 (2D position encoding)
       attention_mask: [1, 1, seq_len, seq_len], nonzero = masked."""
    S, B, H = hidden_states.shape
    assert (S, B, H) == (SEQ, BATCH, HIDDEN)

    # one batch-major (B*S, H) activation slab (tiny wrapper-side transpose; gives the
    # kernel clean 8-sublane-aligned per-batch row blocks).
    x2d = jnp.transpose(hidden_states, (1, 0, 2)).astype(jnp.float32).reshape(ROWS, H)

    cos_t, sin_t = _make_rotary_tables(position_ids)

    # mask + query_key_layer_scaling_coeff folded into a single additive bias.
    # TODO(synk): per-batch / per-head attention masks are collapsed to one (S, S) bias.
    mask = attention_mask.reshape(S, S) != 0
    bias = jnp.where(mask, jnp.float32(-10000.0 * QK_COEFF), jnp.float32(0.0))

    wqkv_aug, bqkv_aug = _relayout_qkv(params["wqkv"], params["bqkv"])

    operands = [
        x2d, cos_t, sin_t, bias,
        params["ln1_w"], params["ln1_b"], wqkv_aug, bqkv_aug,
        params["wo"], params["bo"], params["ln2_w"], params["ln2_b"],
        params["w1"], params["b1"], params["w2"], params["b2"],
    ]
    in_specs = [pl.BlockSpec(op.shape, lambda i: (0, 0)) for op in operands]

    out2d = pl.pallas_call(
        glm_block_kernel,
        out_shape=jax.ShapeDtypeStruct((ROWS, H), jnp.float32),
        grid=(1,),                                   # single step: whole block in one shot
        in_specs=in_specs,
        out_specs=pl.BlockSpec((ROWS, H), lambda i: (0, 0)),
        compiler_params=pltpu.CompilerParams(dimension_semantics=("arbitrary",)),
    )(*operands)

    return jnp.transpose(out2d.reshape(B, S, H), (1, 0, 2))   # back to [seq, batch, hidden]


def init_params(key):
    ks = jax.random.split(key, 8)

    def w(k, fan_in, fan_out):
        # stored already transposed vs. torch.nn.Linear (i.e. (in, out) = W.T)
        return jax.random.normal(k, (fan_in, fan_out), jnp.float32) * 0.02

    def b(k, n):
        return jax.random.normal(k, (1, n), jnp.float32) * 0.02

    return {
        "ln1_w": jnp.ones((1, HIDDEN), jnp.float32),
        "ln1_b": jnp.zeros((1, HIDDEN), jnp.float32),
        "ln2_w": jnp.ones((1, HIDDEN), jnp.float32),
        "ln2_b": jnp.zeros((1, HIDDEN), jnp.float32),
        # qkv columns grouped per head as [q_h | k_h | v_h] (torch GLM convention)
        "wqkv": w(ks[0], HIDDEN, 3 * HIDDEN), "bqkv": b(ks[1], 3 * HIDDEN),
        "wo":   w(ks[2], HIDDEN, HIDDEN),     "bo":   b(ks[3], HIDDEN),
        "w1":   w(ks[4], HIDDEN, INNER),      "b1":   b(ks[5], INNER),
        "w2":   w(ks[6], INNER, HIDDEN),      "b2":   b(ks[7], HIDDEN),
    }


if __name__ == "__main__":
    key = jax.random.PRNGKey(0)
    kx, kp = jax.random.split(key)
    params = init_params(kp)

    hidden_states = jax.random.normal(kx, (SEQ, BATCH, HIDDEN), jnp.float32)

    # GLM-style 2D position ids: channel 0 = token positions, channel 1 = block positions
    pos0 = jnp.broadcast_to(jnp.arange(SEQ, dtype=jnp.int32)[None, :], (BATCH, SEQ))
    pos1 = jnp.concatenate(
        [jnp.zeros((BATCH, SEQ - 2), jnp.int32),
         jnp.broadcast_to(jnp.arange(1, 3, dtype=jnp.int32)[None, :], (BATCH, 2))],
        axis=1)
    position_ids = jnp.stack([pos0, pos1], axis=1)            # (B, 2, S)

    # mask: True (nonzero) where attention is NOT allowed (causal upper triangle)
    causal = (jnp.arange(SEQ)[None, :] > jnp.arange(SEQ)[:, None])
    attention_mask = causal[None, None]                       # (1, 1, S, S)

    out = glm_block_forward(hidden_states, position_ids, attention_mask, params)
    out = jax.block_until_ready(out)
    assert out.shape == (SEQ, BATCH, HIDDEN)
    assert bool(jnp.all(jnp.isfinite(out)))
    print("KERNEL_OK")
</pallas_src>

<mosaic_0001>
module attributes {stable_mosaic.version = 11 : i64} {
  func.func @glm_block_kernel(%arg0: i32, %arg1: memref<16x32xf32, #tpu.memory_space<vmem>>, %arg2: memref<16x32xf32, #tpu.memory_space<vmem>>, %arg3: memref<16x32xf32, #tpu.memory_space<vmem>>, %arg4: memref<8x8xf32, #tpu.memory_space<vmem>>, %arg5: memref<1x32xf32, #tpu.memory_space<vmem>>, %arg6: memref<1x32xf32, #tpu.memory_space<vmem>>, %arg7: memref<32x160xf32, #tpu.memory_space<vmem>>, %arg8: memref<1x160xf32, #tpu.memory_space<vmem>>, %arg9: memref<32x32xf32, #tpu.memory_space<vmem>>, %arg10: memref<1x32xf32, #tpu.memory_space<vmem>>, %arg11: memref<1x32xf32, #tpu.memory_space<vmem>>, %arg12: memref<1x32xf32, #tpu.memory_space<vmem>>, %arg13: memref<32x128xf32, #tpu.memory_space<vmem>>, %arg14: memref<1x128xf32, #tpu.memory_space<vmem>>, %arg15: memref<128x32xf32, #tpu.memory_space<vmem>>, %arg16: memref<1x32xf32, #tpu.memory_space<vmem>>, %arg17: memref<16x32xf32, #tpu.memory_space<vmem>>) attributes {dimension_semantics = [#tpu.dimension_semantics<arbitrary>], iteration_bounds = array<i64: 1>, scalar_prefetch = 0 : i64, scratch_operands = 0 : i64, tpu.core_type = #tpu.core_type<tc>, window_params = [{pipeline_mode = #tpu.pipeline_mode<synchronous>, transform_indices = @transform_0, window_bounds = array<i64: 16, 32>}, {pipeline_mode = #tpu.pipeline_mode<synchronous>, transform_indices = @transform_1, window_bounds = array<i64: 16, 32>}, {pipeline_mode = #tpu.pipeline_mode<synchronous>, transform_indices = @transform_2, window_bounds = array<i64: 16, 32>}, {pipeline_mode = #tpu.pipeline_mode<synchronous>, transform_indices = @transform_3, window_bounds = array<i64: 8, 8>}, {pipeline_mode = #tpu.pipeline_mode<synchronous>, transform_indices = @transform_4, window_bounds = array<i64: 1, 32>}, {pipeline_mode = #tpu.pipeline_mode<synchronous>, transform_indices = @transform_5, window_bounds = array<i64: 1, 32>}, {pipeline_mode = #tpu.pipeline_mode<synchronous>, transform_indices = @transform_6, window_bounds = array<i64: 32, 160>}, {pipeline_mode = #tpu.pipeline_mode<synchronous>, transform_indices = @transform_7, window_bounds = array<i64: 1, 160>}, {pipeline_mode = #tpu.pipeline_mode<synchronous>, transform_indices = @transform_8, window_bounds = array<i64: 32, 32>}, {pipeline_mode = #tpu.pipeline_mode<synchronous>, transform_indices = @transform_9, window_bounds = array<i64: 1, 32>}, {pipeline_mode = #tpu.pipeline_mode<synchronous>, transform_indices = @transform_10, window_bounds = array<i64: 1, 32>}, {pipeline_mode = #tpu.pipeline_mode<synchronous>, transform_indices = @transform_11, window_bounds = array<i64: 1, 32>}, {pipeline_mode = #tpu.pipeline_mode<synchronous>, transform_indices = @transform_12, window_bounds = array<i64: 32, 128>}, {pipeline_mode = #tpu.pipeline_mode<synchronous>, transform_indices = @transform_13, window_bounds = array<i64: 1, 128>}, {pipeline_mode = #tpu.pipeline_mode<synchronous>, transform_indices = @transform_14, window_bounds = array<i64: 128, 32>}, {pipeline_mode = #tpu.pipeline_mode<synchronous>, transform_indices = @transform_15, window_bounds = array<i64: 1, 32>}, {pipeline_mode = #tpu.pipeline_mode<synchronous>, transform_indices = @transform_16, window_bounds = array<i64: 16, 32>}]} {
    %c0 = arith.constant 0 : index
    %c0_0 = arith.constant 0 : index
    %0 = vector.load %arg1[%c0, %c0_0] : memref<16x32xf32, #tpu.memory_space<vmem>>, vector<16x32xf32>
    %c0_1 = arith.constant 0 : index
    %c0_2 = arith.constant 0 : index
    %1 = vector.load %arg2[%c0_1, %c0_2] : memref<16x32xf32, #tpu.memory_space<vmem>>, vector<16x32xf32>
    %c0_3 = arith.constant 0 : index
    %c0_4 = arith.constant 0 : index
    %2 = vector.load %arg3[%c0_3, %c0_4] : memref<16x32xf32, #tpu.memory_space<vmem>>, vector<16x32xf32>
    %c0_5 = arith.constant 0 : index
    %c0_6 = arith.constant 0 : index
    %3 = vector.load %arg4[%c0_5, %c0_6] : memref<8x8xf32, #tpu.memory_space<vmem>>, vector<8x8xf32>
    %c0_7 = arith.constant 0 : index
    %c0_8 = arith.constant 0 : index
    %4 = vector.load %arg5[%c0_7, %c0_8] : memref<1x32xf32, #tpu.memory_space<vmem>>, vector<1x32xf32>
    %c0_9 = arith.constant 0 : index
    %c0_10 = arith.constant 0 : index
    %5 = vector.load %arg6[%c0_9, %c0_10] : memref<1x32xf32, #tpu.memory_space<vmem>>, vector<1x32xf32>
    %cst = arith.constant dense<0.000000e+00> : vector<16xf32>
    %6 = vector.multi_reduction <add>, %0, %cst [1] : vector<16x32xf32> to vector<16xf32>
    %7 = vector.shape_cast %6 : vector<16xf32> to vector<16x1xf32>
    %cst_11 = arith.constant 3.200000e+01 : f32
    %8 = vector.broadcast %cst_11 : f32 to vector<16x1xf32>
    %9 = arith.divf %7, %8 : vector<16x1xf32>
    %10 = vector.broadcast %9 : vector<16x1xf32> to vector<16x32xf32>
    %11 = arith.subf %0, %10 : vector<16x32xf32>
    %12 = arith.mulf %11, %11 : vector<16x32xf32>
    %cst_12 = arith.constant dense<0.000000e+00> : vector<16xf32>
    %13 = vector.multi_reduction <add>, %12, %cst_12 [1] : vector<16x32xf32> to vector<16xf32>
    %14 = vector.shape_cast %13 : vector<16xf32> to vector<16x1xf32>
    %cst_13 = arith.constant 3.200000e+01 : f32
    %15 = vector.broadcast %cst_13 : f32 to vector<16x1xf32>
    %16 = arith.divf %14, %15 : vector<16x1xf32>
    %17 = vector.broadcast %9 : vector<16x1xf32> to vector<16x32xf32>
    %18 = arith.subf %0, %17 : vector<16x32xf32>
    %cst_14 = arith.constant 9.99999974E-6 : f32
    %19 = vector.broadcast %cst_14 : f32 to vector<16x1xf32>
    %20 = arith.addf %16, %19 : vector<16x1xf32>
    %21 = math.rsqrt %20 : vector<16x1xf32>
    %22 = vector.broadcast %21 : vector<16x1xf32> to vector<16x32xf32>
    %23 = arith.mulf %18, %22 : vector<16x32xf32>
    %24 = vector.broadcast %4 : vector<1x32xf32> to vector<16x32xf32>
    %25 = arith.mulf %23, %24 : vector<16x32xf32>
    %26 = vector.broadcast %5 : vector<1x32xf32> to vector<16x32xf32>
    %27 = arith.addf %25, %26 : vector<16x32xf32>
    %c0_15 = arith.constant 0 : index
    %c0_16 = arith.constant 0 : index
    %28 = vector.load %arg7[%c0_15, %c0_16] : memref<32x160xf32, #tpu.memory_space<vmem>>, vector<32x160xf32>
    %cst_17 = arith.constant dense<0.000000e+00> : vector<16x160xf32>
    %29 = tpu.matmul %27, %28, %cst_17 {dimension_numbers = #tpu.dot_dimension_numbers<[1], [0], [0], [1], [0, 0, 1, 1], [], []>} : vector<16x32xf32>, vector<32x160xf32>, vector<16x160xf32> -> vector<16x160xf32>
    %c0_18 = arith.constant 0 : index
    %c0_19 = arith.constant 0 : index
    %30 = vector.load %arg8[%c0_18, %c0_19] : memref<1x160xf32, #tpu.memory_space<vmem>>, vector<1x160xf32>
    %31 = vector.broadcast %30 : vector<1x160xf32> to vector<16x160xf32>
    %32 = arith.addf %29, %31 : vector<16x160xf32>
    %33 = vector.extract_strided_slice %32 {offsets = [0, 0], sizes = [16, 32], strides = [1, 1]} : vector<16x160xf32> to vector<16x32xf32>
    %34 = vector.extract_strided_slice %32 {offsets = [0, 32], sizes = [16, 32], strides = [1, 1]} : vector<16x160xf32> to vector<16x32xf32>
    %35 = vector.extract_strided_slice %32 {offsets = [0, 64], sizes = [16, 32], strides = [1, 1]} : vector<16x160xf32> to vector<16x32xf32>
    %36 = vector.extract_strided_slice %32 {offsets = [0, 96], sizes = [16, 32], strides = [1, 1]} : vector<16x160xf32> to vector<16x32xf32>
    %37 = vector.extract_strided_slice %32 {offsets = [0, 128], sizes = [16, 32], strides = [1, 1]} : vector<16x160xf32> to vector<16x32xf32>
    %38 = arith.mulf %33, %1 : vector<16x32xf32>
    %39 = arith.mulf %36, %2 : vector<16x32xf32>
    %40 = arith.addf %38, %39 : vector<16x32xf32>
    %41 = arith.mulf %34, %1 : vector<16x32xf32>
    %42 = arith.mulf %37, %2 : vector<16x32xf32>
    %43 = arith.addf %41, %42 : vector<16x32xf32>
    %44 = vector.shape_cast %40 : vector<16x32xf32> to vector<2x8x32xf32>
    %45 = vector.shape_cast %43 : vector<16x32xf32> to vector<2x8x32xf32>
    %46 = vector.shape_cast %35 : vector<16x32xf32> to vector<2x8x32xf32>
    %c0_20 = arith.constant 0 : index
    %c0_21 = arith.constant 0 : index
    %47 = vector.load %arg9[%c0_20, %c0_21] : memref<32x32xf32, #tpu.memory_space<vmem>>, vector<32x32xf32>
    %48 = vector.extract_strided_slice %44 {offsets = [0, 0, 0], sizes = [2, 8, 16], strides = [1, 1, 1]} : vector<2x8x32xf32> to vector<2x8x16xf32>
    %cst_22 = arith.constant 2.500000e-01 : f32
    %49 = vector.broadcast %cst_22 : f32 to vector<2x8x16xf32>
    %50 = arith.mulf %48, %49 : vector<2x8x16xf32>
    %51 = vector.extract_strided_slice %45 {offsets = [0, 0, 0], sizes = [2, 8, 16], strides = [1, 1, 1]} : vector<2x8x32xf32> to vector<2x8x16xf32>
    %52 = vector.extract_strided_slice %46 {offsets = [0, 0, 0], sizes = [2, 8, 16], strides = [1, 1, 1]} : vector<2x8x32xf32> to vector<2x8x16xf32>
    "tpu.trace_start"() <{level = 10 : i32, message = "bqd,bkd->bqk"}> : () -> ()
    %cst_23 = arith.constant dense<0.000000e+00> : vector<2x8x8xf32>
    %53 = tpu.matmul %50, %51, %cst_23 {dimension_numbers = #tpu.dot_dimension_numbers<[2], [2], [1], [1], [0, 0, 0, 1, 1, 1], [0], [0]>} : vector<2x8x16xf32>, vector<2x8x16xf32>, vector<2x8x8xf32> -> vector<2x8x8xf32>
    "tpu.trace_stop"() : () -> ()
    %54 = vector.shape_cast %3 : vector<8x8xf32> to vector<1x8x8xf32>
    %55 = vector.broadcast %54 : vector<1x8x8xf32> to vector<2x8x8xf32>
    %56 = arith.addf %53, %55 : vector<2x8x8xf32>
    %cst_24 = arith.constant dense<0xFF800000> : vector<2x8xf32>
    %57 = vector.multi_reduction <maximumf>, %56, %cst_24 [2] : vector<2x8x8xf32> to vector<2x8xf32>
    %58 = vector.shape_cast %57 : vector<2x8xf32> to vector<2x8x1xf32>
    %59 = vector.broadcast %58 : vector<2x8x1xf32> to vector<2x8x8xf32>
    %60 = arith.subf %56, %59 : vector<2x8x8xf32>
    %61 = math.exp %60 : vector<2x8x8xf32>
    %cst_25 = arith.constant dense<0.000000e+00> : vector<2x8xf32>
    %62 = vector.multi_reduction <add>, %61, %cst_25 [2] : vector<2x8x8xf32> to vector<2x8xf32>
    %63 = vector.shape_cast %62 : vector<2x8xf32> to vector<2x8x1xf32>
    %64 = tpu.reciprocal %63 {approx = true} : vector<2x8x1xf32> -> vector<2x8x1xf32>
    %65 = vector.broadcast %64 : vector<2x8x1xf32> to vector<2x8x8xf32>
    %66 = arith.mulf %61, %65 : vector<2x8x8xf32>
    "tpu.trace_start"() <{level = 10 : i32, message = "bqk,bkd->bqd"}> : () -> ()
    %cst_26 = arith.constant dense<0.000000e+00> : vector<2x8x16xf32>
    %67 = tpu.matmul %66, %52, %cst_26 {dimension_numbers = #tpu.dot_dimension_numbers<[2], [1], [1], [2], [0, 0, 0, 1, 1, 2], [0], [0]>} : vector<2x8x8xf32>, vector<2x8x16xf32>, vector<2x8x16xf32> -> vector<2x8x16xf32>
    "tpu.trace_stop"() : () -> ()
    %68 = vector.shape_cast %67 : vector<2x8x16xf32> to vector<16x16xf32>
    %69 = vector.extract_strided_slice %47 {offsets = [0, 0], sizes = [16, 32], strides = [1, 1]} : vector<32x32xf32> to vector<16x32xf32>
    %cst_27 = arith.constant dense<0.000000e+00> : vector<16x32xf32>
    %70 = tpu.matmul %68, %69, %cst_27 {dimension_numbers = #tpu.dot_dimension_numbers<[1], [0], [0], [1], [0, 0, 1, 1], [], []>} : vector<16x16xf32>, vector<16x32xf32>, vector<16x32xf32> -> vector<16x32xf32>
    %71 = vector.extract_strided_slice %44 {offsets = [0, 0, 16], sizes = [2, 8, 16], strides = [1, 1, 1]} : vector<2x8x32xf32> to vector<2x8x16xf32>
    %cst_28 = arith.constant 2.500000e-01 : f32
    %72 = vector.broadcast %cst_28 : f32 to vector<2x8x16xf32>
    %73 = arith.mulf %71, %72 : vector<2x8x16xf32>
    %74 = vector.extract_strided_slice %45 {offsets = [0, 0, 16], sizes = [2, 8, 16], strides = [1, 1, 1]} : vector<2x8x32xf32> to vector<2x8x16xf32>
    %75 = vector.extract_strided_slice %46 {offsets = [0, 0, 16], sizes = [2, 8, 16], strides = [1, 1, 1]} : vector<2x8x32xf32> to vector<2x8x16xf32>
    "tpu.trace_start"() <{level = 10 : i32, message = "bqd,bkd->bqk"}> : () -> ()
    %cst_29 = arith.constant dense<0.000000e+00> : vector<2x8x8xf32>
    %76 = tpu.matmul %73, %74, %cst_29 {dimension_numbers = #tpu.dot_dimension_numbers<[2], [2], [1], [1], [0, 0, 0, 1, 1, 1], [0], [0]>} : vector<2x8x16xf32>, vector<2x8x16xf32>, vector<2x8x8xf32> -> vector<2x8x8xf32>
    "tpu.trace_stop"() : () -> ()
    %77 = vector.shape_cast %3 : vector<8x8xf32> to vector<1x8x8xf32>
    %78 = vector.broadcast %77 : vector<1x8x8xf32> to vector<2x8x8xf32>
    %79 = arith.addf %76, %78 : vector<2x8x8xf32>
    %cst_30 = arith.constant dense<0xFF800000> : vector<2x8xf32>
    %80 = vector.multi_reduction <maximumf>, %79, %cst_30 [2] : vector<2x8x8xf32> to vector<2x8xf32>
    %81 = vector.shape_cast %80 : vector<2x8xf32> to vector<2x8x1xf32>
    %82 = vector.broadcast %81 : vector<2x8x1xf32> to vector<2x8x8xf32>
    %83 = arith.subf %79, %82 : vector<2x8x8xf32>
    %84 = math.exp %83 : vector<2x8x8xf32>
    %cst_31 = arith.constant dense<0.000000e+00> : vector<2x8xf32>
    %85 = vector.multi_reduction <add>, %84, %cst_31 [2] : vector<2x8x8xf32> to vector<2x8xf32>
    %86 = vector.shape_cast %85 : vector<2x8xf32> to vector<2x8x1xf32>
    %87 = tpu.reciprocal %86 {approx = true} : vector<2x8x1xf32> -> vector<2x8x1xf32>
    %88 = vector.broadcast %87 : vector<2x8x1xf32> to vector<2x8x8xf32>
    %89 = arith.mulf %84, %88 : vector<2x8x8xf32>
    "tpu.trace_start"() <{level = 10 : i32, message = "bqk,bkd->bqd"}> : () -> ()
    %cst_32 = arith.constant dense<0.000000e+00> : vector<2x8x16xf32>
    %90 = tpu.matmul %89, %75, %cst_32 {dimension_numbers = #tpu.dot_dimension_numbers<[2], [1], [1], [2], [0, 0, 0, 1, 1, 2], [0], [0]>} : vector<2x8x8xf32>, vector<2x8x16xf32>, vector<2x8x16xf32> -> vector<2x8x16xf32>
    "tpu.trace_stop"() : () -> ()
    %91 = vector.shape_cast %90 : vector<2x8x16xf32> to vector<16x16xf32>
    %92 = vector.extract_strided_slice %47 {offsets = [16, 0], sizes = [16, 32], strides = [1, 1]} : vector<32x32xf32> to vector<16x32xf32>
    %cst_33 = arith.constant dense<0.000000e+00> : vector<16x32xf32>
    %93 = tpu.matmul %91, %92, %cst_33 {dimension_numbers = #tpu.dot_dimension_numbers<[1], [0], [0], [1], [0, 0, 1, 1], [], []>} : vector<16x16xf32>, vector<16x32xf32>, vector<16x32xf32> -> vector<16x32xf32>
    %94 = arith.addf %70, %93 : vector<16x32xf32>
    %c0_34 = arith.constant 0 : index
    %c0_35 = arith.constant 0 : index
    %95 = vector.load %arg10[%c0_34, %c0_35] : memref<1x32xf32, #tpu.memory_space<vmem>>, vector<1x32xf32>
    %96 = vector.broadcast %95 : vector<1x32xf32> to vector<16x32xf32>
    %97 = arith.addf %94, %96 : vector<16x32xf32>
    %cst_36 = arith.constant 2.82842708 : f32
    %98 = vector.broadcast %cst_36 : f32 to vector<16x32xf32>
    %99 = arith.mulf %27, %98 : vector<16x32xf32>
    %100 = arith.addf %99, %97 : vector<16x32xf32>
    %c0_37 = arith.constant 0 : index
    %c0_38 = arith.constant 0 : index
    %101 = vector.load %arg11[%c0_37, %c0_38] : memref<1x32xf32, #tpu.memory_space<vmem>>, vector<1x32xf32>
    %c0_39 = arith.constant 0 : index
    %c0_40 = arith.constant 0 : index
    %102 = vector.load %arg12[%c0_39, %c0_40] : memref<1x32xf32, #tpu.memory_space<vmem>>, vector<1x32xf32>
    %cst_41 = arith.constant dense<0.000000e+00> : vector<16xf32>
    %103 = vector.multi_reduction <add>, %100, %cst_41 [1] : vector<16x32xf32> to vector<16xf32>
    %104 = vector.shape_cast %103 : vector<16xf32> to vector<16x1xf32>
    %cst_42 = arith.constant 3.200000e+01 : f32
    %105 = vector.broadcast %cst_42 : f32 to vector<16x1xf32>
    %106 = arith.divf %104, %105 : vector<16x1xf32>
    %107 = vector.broadcast %106 : vector<16x1xf32> to vector<16x32xf32>
    %108 = arith.subf %100, %107 : vector<16x32xf32>
    %109 = arith.mulf %108, %108 : vector<16x32xf32>
    %cst_43 = arith.constant dense<0.000000e+00> : vector<16xf32>
    %110 = vector.multi_reduction <add>, %109, %cst_43 [1] : vector<16x32xf32> to vector<16xf32>
    %111 = vector.shape_cast %110 : vector<16xf32> to vector<16x1xf32>
    %cst_44 = arith.constant 3.200000e+01 : f32
    %112 = vector.broadcast %cst_44 : f32 to vector<16x1xf32>
    %113 = arith.divf %111, %112 : vector<16x1xf32>
    %114 = vector.broadcast %106 : vector<16x1xf32> to vector<16x32xf32>
    %115 = arith.subf %100, %114 : vector<16x32xf32>
    %cst_45 = arith.constant 9.99999974E-6 : f32
    %116 = vector.broadcast %cst_45 : f32 to vector<16x1xf32>
    %117 = arith.addf %113, %116 : vector<16x1xf32>
    %118 = math.rsqrt %117 : vector<16x1xf32>
    %119 = vector.broadcast %118 : vector<16x1xf32> to vector<16x32xf32>
    %120 = arith.mulf %115, %119 : vector<16x32xf32>
    %121 = vector.broadcast %101 : vector<1x32xf32> to vector<16x32xf32>
    %122 = arith.mulf %120, %121 : vector<16x32xf32>
    %123 = vector.broadcast %102 : vector<1x32xf32> to vector<16x32xf32>
    %124 = arith.addf %122, %123 : vector<16x32xf32>
    %c0_46 = arith.constant 0 : index
    %c0_47 = arith.constant 0 : index
    %125 = vector.load %arg13[%c0_46, %c0_47] : memref<32x128xf32, #tpu.memory_space<vmem>>, vector<32x128xf32>
    %cst_48 = arith.constant dense<0.000000e+00> : vector<16x128xf32>
    %126 = tpu.matmul %124, %125, %cst_48 {dimension_numbers = #tpu.dot_dimension_numbers<[1], [0], [0], [1], [0, 0, 1, 1], [], []>} : vector<16x32xf32>, vector<32x128xf32>, vector<16x128xf32> -> vector<16x128xf32>
    %c0_49 = arith.constant 0 : index
    %c0_50 = arith.constant 0 : index
    %127 = vector.load %arg14[%c0_49, %c0_50] : memref<1x128xf32, #tpu.memory_space<vmem>>, vector<1x128xf32>
    %128 = vector.broadcast %127 : vector<1x128xf32> to vector<16x128xf32>
    %129 = arith.addf %126, %128 : vector<16x128xf32>
    %cst_51 = arith.constant 5.000000e-01 : f32
    %130 = vector.broadcast %cst_51 : f32 to vector<16x128xf32>
    %131 = arith.mulf %130, %129 : vector<16x128xf32>
    %cst_52 = arith.constant 0.797884583 : f32
    %132 = vector.broadcast %cst_52 : f32 to vector<16x128xf32>
    %133 = arith.mulf %132, %129 : vector<16x128xf32>
    %cst_53 = arith.constant 4.471500e-02 : f32
    %134 = vector.broadcast %cst_53 : f32 to vector<16x128xf32>
    %135 = arith.mulf %134, %129 : vector<16x128xf32>
    %136 = arith.mulf %135, %129 : vector<16x128xf32>
    %cst_54 = arith.constant 1.000000e+00 : f32
    %137 = vector.broadcast %cst_54 : f32 to vector<16x128xf32>
    %138 = arith.addf %137, %136 : vector<16x128xf32>
    %139 = arith.mulf %133, %138 : vector<16x128xf32>
    %140 = math.tanh %139 : vector<16x128xf32>
    %cst_55 = arith.constant 1.000000e+00 : f32
    %141 = vector.broadcast %cst_55 : f32 to vector<16x128xf32>
    %142 = arith.addf %141, %140 : vector<16x128xf32>
    %143 = arith.mulf %131, %142 : vector<16x128xf32>
    %c0_56 = arith.constant 0 : index
    %c0_57 = arith.constant 0 : index
    %144 = vector.load %arg15[%c0_56, %c0_57] : memref<128x32xf32, #tpu.memory_space<vmem>>, vector<128x32xf32>
    %cst_58 = arith.constant dense<0.000000e+00> : vector<16x32xf32>
    %145 = tpu.matmul %143, %144, %cst_58 {dimension_numbers = #tpu.dot_dimension_numbers<[1], [0], [0], [1], [0, 0, 1, 1], [], []>} : vector<16x128xf32>, vector<128x32xf32>, vector<16x32xf32> -> vector<16x32xf32>
    %c0_59 = arith.constant 0 : index
    %c0_60 = arith.constant 0 : index
    %146 = vector.load %arg16[%c0_59, %c0_60] : memref<1x32xf32, #tpu.memory_space<vmem>>, vector<1x32xf32>
    %147 = vector.broadcast %146 : vector<1x32xf32> to vector<16x32xf32>
    %148 = arith.addf %145, %147 : vector<16x32xf32>
    %cst_61 = arith.constant 2.82842708 : f32
    %149 = vector.broadcast %cst_61 : f32 to vector<16x32xf32>
    %150 = arith.mulf %124, %149 : vector<16x32xf32>
    %151 = arith.addf %150, %148 : vector<16x32xf32>
    %c0_62 = arith.constant 0 : index
    %c0_63 = arith.constant 0 : index
    %152 = vector.load %arg17[%c0_62, %c0_63] : memref<16x32xf32, #tpu.memory_space<vmem>>, vector<16x32xf32>
    tpu.vector_store %arg17[%c0_62, %c0_63], %151 {strides = array<i32>} : memref<16x32xf32, #tpu.memory_space<vmem>>, vector<16x32xf32>,
    return
  }
  func.func @transform_0(%arg0: i32) -> (i32, i32) {
    %c0_i32 = arith.constant 0 : i32
    %c0_i32_0 = arith.constant 0 : i32
    %c0_i32_1 = arith.constant 0 : i32
    return %c0_i32, %c0_i32_0 : i32, i32
  }
  func.func @transform_1(%arg0: i32) -> (i32, i32) {
    %c0_i32 = arith.constant 0 : i32
    %c0_i32_0 = arith.constant 0 : i32
    %c0_i32_1 = arith.constant 0 : i32
    return %c0_i32, %c0_i32_0 : i32, i32
  }
  func.func @transform_2(%arg0: i32) -> (i32, i32) {
    %c0_i32 = arith.constant 0 : i32
    %c0_i32_0 = arith.constant 0 : i32
    %c0_i32_1 = arith.constant 0 : i32
    return %c0_i32, %c0_i32_0 : i32, i32
  }
  func.func @transform_3(%arg0: i32) -> (i32, i32) {
    %c0_i32 = arith.constant 0 : i32
    %c0_i32_0 = arith.constant 0 : i32
    %c0_i32_1 = arith.constant 0 : i32
    return %c0_i32, %c0_i32_0 : i32, i32
  }
  func.func @transform_4(%arg0: i32) -> (i32, i32) {
    %c0_i32 = arith.constant 0 : i32
    %c0_i32_0 = arith.constant 0 : i32
    %c0_i32_1 = arith.constant 0 : i32
    return %c0_i32, %c0_i32_0 : i32, i32
  }
  func.func @transform_5(%arg0: i32) -> (i32, i32) {
    %c0_i32 = arith.constant 0 : i32
    %c0_i32_0 = arith.constant 0 : i32
    %c0_i32_1 = arith.constant 0 : i32
    return %c0_i32, %c0_i32_0 : i32, i32
  }
  func.func @transform_6(%arg0: i32) -> (i32, i32) {
    %c0_i32 = arith.constant 0 : i32
    %c0_i32_0 = arith.constant 0 : i32
    %c0_i32_1 = arith.constant 0 : i32
    return %c0_i32, %c0_i32_0 : i32, i32
  }
  func.func @transform_7(%arg0: i32) -> (i32, i32) {
    %c0_i32 = arith.constant 0 : i32
    %c0_i32_0 = arith.constant 0 : i32
    %c0_i32_1 = arith.constant 0 : i32
    return %c0_i32, %c0_i32_0 : i32, i32
  }
  func.func @transform_8(%arg0: i32) -> (i32, i32) {
    %c0_i32 = arith.constant 0 : i32
    %c0_i32_0 = arith.constant 0 : i32
    %c0_i32_1 = arith.constant 0 : i32
    return %c0_i32, %c0_i32_0 : i32, i32
  }
  func.func @transform_9(%arg0: i32) -> (i32, i32) {
    %c0_i32 = arith.constant 0 : i32
    %c0_i32_0 = arith.constant 0 : i32
    %c0_i32_1 = arith.constant 0 : i32
    return %c0_i32, %c0_i32_0 : i32, i32
  }
  func.func @transform_10(%arg0: i32) -> (i32, i32) {
    %c0_i32 = arith.constant 0 : i32
    %c0_i32_0 = arith.constant 0 : i32
    %c0_i32_1 = arith.constant 0 : i32
    return %c0_i32, %c0_i32_0 : i32, i32
  }
  func.func @transform_11(%arg0: i32) -> (i32, i32) {
    %c0_i32 = arith.constant 0 : i32
    %c0_i32_0 = arith.constant 0 : i32
    %c0_i32_1 = arith.constant 0 : i32
    return %c0_i32, %c0_i32_0 : i32, i32
  }
  func.func @transform_12(%arg0: i32) -> (i32, i32) {
    %c0_i32 = arith.constant 0 : i32
    %c0_i32_0 = arith.constant 0 : i32
    %c0_i32_1 = arith.constant 0 : i32
    return %c0_i32, %c0_i32_0 : i32, i32
  }
  func.func @transform_13(%arg0: i32) -> (i32, i32) {
    %c0_i32 = arith.constant 0 : i32
    %c0_i32_0 = arith.constant 0 : i32
    %c0_i32_1 = arith.constant 0 : i32
    return %c0_i32, %c0_i32_0 : i32, i32
  }
  func.func @transform_14(%arg0: i32) -> (i32, i32) {
    %c0_i32 = arith.constant 0 : i32
    %c0_i32_0 = arith.constant 0 : i32
    %c0_i32_1 = arith.constant 0 : i32
    return %c0_i32, %c0_i32_0 : i32, i32
  }
  func.func @transform_15(%arg0: i32) -> (i32, i32) {
    %c0_i32 = arith.constant 0 : i32
    %c0_i32_0 = arith.constant 0 : i32
    %c0_i32_1 = arith.constant 0 : i32
    return %c0_i32, %c0_i32_0 : i32, i32
  }
  func.func @transform_16(%arg0: i32) -> (i32, i32) {
    %c0_i32 = arith.constant 0 : i32
    %c0_i32_0 = arith.constant 0 : i32
    %c0_i32_1 = arith.constant 0 : i32
    return %c0_i32, %c0_i32_0 : i32, i32
  }
}

</mosaic_0001>

<llo_original>
// kernel: tpu_custom_call.1
$region0: #{tpu_custom_call.1}
  #allocation0 [shape = 'u32[]', space=smem, size = 0x4, offset = 0x4, fixed_abs, tag = 'smem constant byte address 0x4 - core index']
  #allocation1 [shape = 'u32[72,128]{1,0:T(1,128)}', space=vmem, size = 0x9000, scoped, tag = 'internal scratch']
  %s0 = inlined_call_operand.vmem [shape: f32[16,32], index: 0, kind: input, shape index: {}]
  %s1 = inlined_call_operand.vmem [shape: f32[16,32], index: 1, kind: input, shape index: {}]
  %s2 = inlined_call_operand.hbm [shape: f32[16,32], index: 2, kind: input, shape index: {}]
  %s3 = inlined_call_operand.hbm [shape: f32[8,8], index: 3, kind: input, shape index: {}]
  %s4 = inlined_call_operand.vmem [shape: f32[1,32], index: 4, kind: input, shape index: {}]
  %s5 = inlined_call_operand.hbm [shape: f32[1,32], index: 5, kind: input, shape index: {}]
  %s6 = inlined_call_operand.vmem [shape: f32[32,160], index: 6, kind: input, shape index: {}]
  %s7 = inlined_call_operand.vmem [shape: f32[1,160], index: 7, kind: input, shape index: {}]
  %s8 = inlined_call_operand.vmem [shape: f32[32,32], index: 8, kind: input, shape index: {}]
  %s9 = inlined_call_operand.vmem [shape: f32[1,32], index: 9, kind: input, shape index: {}]
  %s10 = inlined_call_operand.vmem [shape: f32[1,32], index: 10, kind: input, shape index: {}]
  %s11 = inlined_call_operand.vmem [shape: f32[1,32], index: 11, kind: input, shape index: {}]
  %s12 = inlined_call_operand.vmem [shape: f32[32,128], index: 12, kind: input, shape index: {}]
  %s13 = inlined_call_operand.vmem [shape: f32[1,128], index: 13, kind: input, shape index: {}]
  %s14 = inlined_call_operand.vmem [shape: f32[128,32], index: 14, kind: input, shape index: {}]
  %s15 = inlined_call_operand.vmem [shape: f32[1,32], index: 15, kind: input, shape index: {}]
  %s16 = inlined_call_operand.hbm [shape: f32[16,32], index: 16, kind: output, shape index: {}]
  %s17 = sld [smem:[#allocation0]]
  $region86: #{tpu_custom_call.1} parent=0
    _
  %s19 = ssub.s32 1, %s17
  %s20 = scalar_select 0, %s19, %s17
  $region1: #{tpu_custom_call.1} parent=0
    #allocation2 [shape = 'u8[8192]{0}', space=vmem, size = 0x2000, scoped, tag = 'input window, operand 2, single buffered']
    #allocation3 [shape = 's32[1]{0}', space=sflag, size = 0x4, scoped, tag = 'scoped memory for tpu_custom_call.1']
    #allocation4 [shape = 's32[1]{0}', space=sflag, size = 0x4, scoped, tag = 'scoped memory for tpu_custom_call.1']
    #allocation5 [shape = 'u8[4096]{0}', space=vmem, size = 0x1000, scoped, tag = 'input window, operand 3, single buffered']
    #allocation6 [shape = 's32[1]{0}', space=sflag, size = 0x4, scoped, tag = 'scoped memory for tpu_custom_call.1']
    #allocation7 [shape = 'u8[512]{0}', space=vmem, size = 0x400, scoped, tag = 'input window, operand 5, single buffered']
    #allocation8 [shape = 'u8[8192]{0}', space=vmem, size = 0x2000, scoped, tag = 'output window, operand 0, single buffered']
    %21 = vsyncpa [#allocation3], 0
    %22 = vsyncpa [#allocation6], 0
    %23 = vsyncpa [#allocation4], 0
    // Predicated region
    $region2: #{tpu_custom_call.1} parent=1 // pred_check
      _
    $region3: #{tpu_custom_call.1} parent=1 // pred_check_branch
      %25 = sbr.rel (0) target = $region5
    $region4: #{tpu_custom_call.1} parent=1 // pred_region
      _
    $region5: #{tpu_custom_call.1} parent=1 // pred_fallthru
      _
    // Predicated region
    $region6: #{tpu_custom_call.1} parent=1 // pred_check
      _
    $region7: #{tpu_custom_call.1} parent=1 // pred_check_branch
      %27 = sbr.rel (0) target = $region9
    $region8: #{tpu_custom_call.1} parent=1 // pred_region
      _
    $region9: #{tpu_custom_call.1} parent=1 // pred_fallthru
      _
    // Predicated region
    $region10: #{tpu_custom_call.1} parent=1 // pred_check
      _
    $region11: #{tpu_custom_call.1} parent=1 // pred_check_branch
      %29 = sbr.rel (0) target = $region13
    $region12: #{tpu_custom_call.1} parent=1 // pred_region
      %31 = vsyncadd [#allocation3], 0
      %s32 = sshll.u32 %s2, 4
      %s33 = int_to_ptr.hbm [resolvable:$true] %s32
      %s34 = sshll.u32 [#allocation2], 4
      %s35 = int_to_ptr.vmem [resolvable:$true] %s34
      %40 = dma.hbm_to_vmem [thread:$0]  %s33, 256, %s35, [#allocation3], 128, 128, 8
    $region13: #{tpu_custom_call.1} parent=1 // pred_fallthru
      _
    // Predicated region
    $region14: #{tpu_custom_call.1} parent=1 // pred_check
      _
    $region15: #{tpu_custom_call.1} parent=1 // pred_check_branch
      %42 = sbr.rel (0) target = $region17
    $region16: #{tpu_custom_call.1} parent=1 // pred_region
      %44 = vsyncadd [#allocation6], 0
      %s46 = sshll.u32 %s3, 4
      %s47 = int_to_ptr.hbm [resolvable:$true] %s46
      %s48 = sshll.u32 [#allocation5], 4
      %s49 = int_to_ptr.vmem [resolvable:$true] %s48
      %51 = dma.hbm_to_vmem [thread:$0]  %s47, 128, %s49, [#allocation6]
    $region17: #{tpu_custom_call.1} parent=1 // pred_fallthru
      _
    // Predicated region
    $region18: #{tpu_custom_call.1} parent=1 // pred_check
      _
    $region19: #{tpu_custom_call.1} parent=1 // pred_check_branch
      %53 = sbr.rel (0) target = $region21
    $region20: #{tpu_custom_call.1} parent=1 // pred_region
      _
    $region21: #{tpu_custom_call.1} parent=1 // pred_fallthru
      _
    // Predicated region
    $region22: #{tpu_custom_call.1} parent=1 // pred_check
      _
    $region23: #{tpu_custom_call.1} parent=1 // pred_check_branch
      %55 = sbr.rel (0) target = $region25
    $region24: #{tpu_custom_call.1} parent=1 // pred_region
      %57 = vsyncadd [#allocation6], 0
      %s59 = sshll.u32 %s5, 4
      %s60 = int_to_ptr.hbm [resolvable:$true] %s59
      %s61 = sshll.u32 [#allocation7], 4
      %s62 = int_to_ptr.vmem [resolvable:$true] %s61
      %64 = dma.hbm_to_vmem [thread:$0]  %s60, 16, %s62, [#allocation6]
    $region25: #{tpu_custom_call.1} parent=1 // pred_fallthru
      _
    // Predicated region
    $region26: #{tpu_custom_call.1} parent=1 // pred_check
      _
    $region27: #{tpu_custom_call.1} parent=1 // pred_check_branch
      %66 = sbr.rel (0) target = $region29
    $region28: #{tpu_custom_call.1} parent=1 // pred_region
      _
    $region29: #{tpu_custom_call.1} parent=1 // pred_fallthru
      _
    // Predicated region
    $region30: #{tpu_custom_call.1} parent=1 // pred_check
      _
    $region31: #{tpu_custom_call.1} parent=1 // pred_check_branch
      %68 = sbr.rel (0) target = $region33
    $region32: #{tpu_custom_call.1} parent=1 // pred_region
      _
    $region33: #{tpu_custom_call.1} parent=1 // pred_fallthru
      _
    // Predicated region
    $region34: #{tpu_custom_call.1} parent=1 // pred_check
      _
    $region35: #{tpu_custom_call.1} parent=1 // pred_check_branch
      %70 = sbr.rel (0) target = $region37
    $region36: #{tpu_custom_call.1} parent=1 // pred_region
      _
    $region37: #{tpu_custom_call.1} parent=1 // pred_fallthru
      _
    // Predicated region
    $region38: #{tpu_custom_call.1} parent=1 // pred_check
      _
    $region39: #{tpu_custom_call.1} parent=1 // pred_check_branch
      %72 = sbr.rel (0) target = $region41
    $region40: #{tpu_custom_call.1} parent=1 // pred_region
      _
    $region41: #{tpu_custom_call.1} parent=1 // pred_fallthru
      _
    // Predicated region
    $region42: #{tpu_custom_call.1} parent=1 // pred_check
      _
    $region43: #{tpu_custom_call.1} parent=1 // pred_check_branch
      %74 = sbr.rel (0) target = $region45
    $region44: #{tpu_custom_call.1} parent=1 // pred_region
      _
    $region45: #{tpu_custom_call.1} parent=1 // pred_fallthru
      _
    // Predicated region
    $region46: #{tpu_custom_call.1} parent=1 // pred_check
      _
    $region47: #{tpu_custom_call.1} parent=1 // pred_check_branch
      %76 = sbr.rel (0) target = $region49
    $region48: #{tpu_custom_call.1} parent=1 // pred_region
      _
    $region49: #{tpu_custom_call.1} parent=1 // pred_fallthru
      _
    // Predicated region
    $region50: #{tpu_custom_call.1} parent=1 // pred_check
      _
    $region51: #{tpu_custom_call.1} parent=1 // pred_check_branch
      %78 = sbr.rel (0) target = $region53
    $region52: #{tpu_custom_call.1} parent=1 // pred_region
      _
    $region53: #{tpu_custom_call.1} parent=1 // pred_fallthru
      _
    // Predicated region
    $region54: #{tpu_custom_call.1} parent=1 // pred_check
      _
    $region55: #{tpu_custom_call.1} parent=1 // pred_check_branch
      %80 = sbr.rel (0) target = $region57
    $region56: #{tpu_custom_call.1} parent=1 // pred_region
      _
    $region57: #{tpu_custom_call.1} parent=1 // pred_fallthru
      _
    // Predicated region
    $region58: #{tpu_custom_call.1} parent=1 // pred_check
      _
    $region59: #{tpu_custom_call.1} parent=1 // pred_check_branch
      %82 = sbr.rel (0) target = $region61
    $region60: #{tpu_custom_call.1} parent=1 // pred_region
      _
    $region61: #{tpu_custom_call.1} parent=1 // pred_fallthru
      _
    // Predicated region
    $region62: #{tpu_custom_call.1} parent=1 // pred_check
      _
    $region63: #{tpu_custom_call.1} parent=1 // pred_check_branch
      %84 = sbr.rel (0) target = $region65
    $region64: #{tpu_custom_call.1} parent=1 // pred_region
      _
    $region65: #{tpu_custom_call.1} parent=1 // pred_fallthru
      _
    // Predicated region
    $region66: #{tpu_custom_call.1} parent=1 // pred_check
      _
    $region67: #{tpu_custom_call.1} parent=1 // pred_check_branch
      %86 = sbr.rel (0) target = $region69
    $region68: #{tpu_custom_call.1} parent=1 // pred_region
      %88 = dma.done [#allocation3], 256
    $region69: #{tpu_custom_call.1} parent=1 // pred_fallthru
      _
    // Predicated region
    $region70: #{tpu_custom_call.1} parent=1 // pred_check
      _
    $region71: #{tpu_custom_call.1} parent=1 // pred_check_branch
      %90 = sbr.rel (0) target = $region73
    $region72: #{tpu_custom_call.1} parent=1 // pred_region
      %92 = dma.done [#allocation6], 128
    $region73: #{tpu_custom_call.1} parent=1 // pred_fallthru
      _
    // Predicated region
    $region74: #{tpu_custom_call.1} parent=1 // pred_check
      _
    $region75: #{tpu_custom_call.1} parent=1 // pred_check_branch
      %94 = sbr.rel (0) target = $region77
    $region76: #{tpu_custom_call.1} parent=1 // pred_region
      %96 = dma.done [#allocation6], 16
    $region77: #{tpu_custom_call.1} parent=1 // pred_fallthru
      _
    %v97 = vld [vmem:[%s0] sm:$0xff]
    %v98 = vld [vmem:[%s0 + $0x8] sm:$0xff]
    %v99 = vld [vmem:[%s1] sm:$0xff]
    %v100 = vld [vmem:[%s1 + $0x8] sm:$0xff]
    %v101 = vld [vmem:[#allocation2] sm:$0xff]
    %v102 = vld [vmem:[#allocation2 + $0x8] sm:$0xff]
    %v103 = vld [vmem:[#allocation5] sm:$0xff]
    %v104 = vld [vmem:[%s4] sm:$0x1]
    %v105 = vld [vmem:[#allocation7] sm:$0x1]
    %vm106 = vcmask 261120
    %v107 = vsel %vm106, %v97, 0.0
    %108 = vadd.xlane.f32.xlu0 %v107
    %v109 = vpop.xlane.xlu0 %108
    %v110 = vsel %vm106, %v98, 0.0
    %111 = vadd.xlane.f32.xlu0 %v110
    %v112 = vpop.xlane.xlu0 %111
    %v113 = vrcp.pop 32.0
    %v114 = vmul.f32 32.0, %v113
    %v115 = vsub.f32 1.0, %v114
    %v116 = vmul.f32 %v113, %v115
    %v117 = vadd.f32 %v113, %v116
    %vm118 = vweird.f32 %v113
    %v119 = vsel %vm118, %v113, %v117
    %v120 = vmul.f32 %v109, %v119
    %v121 = vmul.f32 %v112, %v119
    %v122 = vsub.f32 %v97, %v120
    %v123 = vsub.f32 %v98, %v121
    %v124 = vmul.f32 %v122, %v122
    %v125 = vmul.f32 %v123, %v123
    %v126 = vsel %vm106, %v124, 0.0
    %127 = vadd.xlane.f32.xlu0 %v126
    %v128 = vpop.xlane.xlu0 %127
    %v129 = vsel %vm106, %v125, 0.0
    %130 = vadd.xlane.f32.xlu0 %v129
    %v131 = vpop.xlane.xlu0 %130
    %v132 = vmul.f32 %v128, %v119
    %v133 = vmul.f32 %v131, %v119
    %v134 = vadd.f32 %v132, 1e-05
    %v135 = vadd.f32 %v133, 1e-05
    %v136 = vrsqrt.pop %v134
    %v137 = vmul.f32 %v136, %v134
    %v138 = vmul.f32 %v137, %v136
    %v139 = vmul.f32 0.5, %v138
    %v140 = vsub.f32 1.5, %v139
    %v141 = vmul.f32 %v136, %v140
    %vm142 = vweird.f32 %v134
    %vm143 = vweird.f32 %v136
    %vm144 = vmor %vm142, %vm143
    %v145 = vsel %vm144, %v136, %v141
    %v146 = vrsqrt.pop %v135
    %v147 = vmul.f32 %v146, %v135
    %v148 = vmul.f32 %v147, %v146
    %v149 = vmul.f32 0.5, %v148
    %v150 = vsub.f32 1.5, %v149
    %v151 = vmul.f32 %v146, %v150
    %vm152 = vweird.f32 %v135
    %vm153 = vweird.f32 %v146
    %vm154 = vmor %vm152, %vm153
    %v155 = vsel %vm154, %v146, %v151
    %v156 = vmul.f32 %v122, %v145
    %v157 = vmul.f32 %v123, %v155
    %v159 = vperm.slane %v104, 0
    %v161 = vmul.f32 %v156, %v159
    %v162 = vmul.f32 %v157, %v159
    %v164 = vperm.slane %v105, 0
    %v166 = vadd.f32 %v161, %v164
    %v167 = vadd.f32 %v162, %v164
    %v168 = vld [vmem:[%s6] sm:$0xff]
    %v169 = vld [vmem:[%s6 + $0x8] sm:$0xff]
    %v170 = vld [vmem:[%s6 + $0x10] sm:$0xff]
    %v171 = vld [vmem:[%s6 + $0x18] sm:$0xff]
    %v172 = vld [vmem:[%s6 + $0x20] sm:$0xff]
    %v173 = vld [vmem:[%s6 + $0x28] sm:$0xff]
    %v174 = vld [vmem:[%s6 + $0x30] sm:$0xff]
    %v175 = vld [vmem:[%s6 + $0x38] sm:$0xff]
    %v176 = vld [vmem:[%s7] sm:$0x3]
    %v178 = vperm.slane %v176, 0
    %v179 = vperm.slane %v176, 1
    %v183 = vsel %vm106, %v166, 0
    %v186 = vsel %vm106, %v167, 0
    %188 = vmatpush.msra.mxu0 0.0
    %189 = vmatpush.msra.mxu0 0.0
    %190 = vmatpush.msra.mxu0 0.0
    %191 = vmatpush.msra.mxu0 0.0
    %192 = vmatpush.msra.mxu0 0.0
    %193 = vmatpush.msra.mxu0 0.0
    %194 = vmatpush.msra.mxu0 0.0
    %195 = vmatpush.msra.mxu0 0.0
    %196 = vmatpush.msra.mxu0 0.0
    %197 = vmatpush.msra.mxu0 0.0
    %198 = vmatpush.msra.mxu0 0.0
    %199 = vmatpush.msra.mxu0 0.0
    %200 = vmatpush.msra.mxu0 %v174
    %201 = vmatpush.msra.mxu0 %v172
    %202 = vmatpush.msra.mxu0 %v170
    %203 = vmatpush.msra.mxu0 %v168
    %204 = vmatmul.f32.gmra.mxu0 %v183
    %v205 = vpop.f32.mrf.mxu0
    %v206 = vadd.f32 %v178, %v205
    %207 = vmatmul.f32.gmra.mxu0 %v186
    %v208 = vpop.f32.mrf.mxu0
    %v209 = vadd.f32 %v178, %v208
    %210 = vdwg.mxu0
    %211 = vmatpush.msra.mxu0 0.0
    %212 = vmatpush.msra.mxu0 0.0
    %213 = vmatpush.msra.mxu0 0.0
    %214 = vmatpush.msra.mxu0 0.0
    %215 = vmatpush.msra.mxu0 0.0
    %216 = vmatpush.msra.mxu0 0.0
    %217 = vmatpush.msra.mxu0 0.0
    %218 = vmatpush.msra.mxu0 0.0
    %219 = vmatpush.msra.mxu0 0.0
    %220 = vmatpush.msra.mxu0 0.0
    %221 = vmatpush.msra.mxu0 0.0
    %222 = vmatpush.msra.mxu0 0.0
    %223 = vmatpush.msra.mxu0 %v175
    %224 = vmatpush.msra.mxu0 %v173
    %225 = vmatpush.msra.mxu0 %v171
    %226 = vmatpush.msra.mxu0 %v169
    %227 = vmatmul.f32.gmra.mxu0 %v183
    %v228 = vpop.f32.mrf.mxu0
    %v229 = vadd.f32 %v179, %v228
    %230 = vmatmul.f32.gmra.mxu0 %v186
    %v231 = vpop.f32.mrf.mxu0
    %v232 = vadd.f32 %v179, %v231
    %233 = vdwg.mxu0
    %v234 = vmul.f32 %v206, %v99
    %v235 = vmul.f32 %v209, %v100
    %238 = vrot.lane.b32.xlu0 %v101, 96
    %v239 = vpop.permute.xlu0 %238
    %240 = vrot.lane.b32.xlu0 %v102, 96
    %v241 = vpop.permute.xlu0 %240
    %v244 = vmul.f32 %v206, %v239
    %v245 = vmul.f32 %v209, %v241
    %248 = vrot.lane.b32.xlu0 %v244, 32
    %v249 = vpop.permute.xlu0 %248
    %250 = vrot.lane.b32.xlu0 %v245, 32
    %v251 = vpop.permute.xlu0 %250
    %v254 = vadd.f32 %v234, %v249
    %v255 = vadd.f32 %v235, %v251
    %258 = vrot.lane.b32.xlu0 %v99, 32
    %v259 = vpop.permute.xlu0 %258
    %260 = vrot.lane.b32.xlu0 %v100, 32
    %v261 = vpop.permute.xlu0 %260
    %v264 = vmul.f32 %v206, %v259
    %v265 = vmul.f32 %v209, %v261
    %v266 = vmul.f32 %v229, %v101
    %v267 = vmul.f32 %v232, %v102
    %270 = vrot.lane.b32.xlu0 %v266, 32
    %v271 = vpop.permute.xlu0 %270
    %272 = vrot.lane.b32.xlu0 %v267, 32
    %v273 = vpop.permute.xlu0 %272
    %v276 = vadd.f32 %v264, %v271
    %v277 = vadd.f32 %v265, %v273
    %v278 = vld [vmem:[%s8] sm:$0xff]
    %v279 = vld [vmem:[%s8 + $0x8] sm:$0xff]
    %v280 = vld [vmem:[%s8 + $0x10] sm:$0xff]
    %v281 = vld [vmem:[%s8 + $0x18] sm:$0xff]
    %v282 = vmul.f32 %v254, 0.25
    %v283 = vmul.f32 %v255, 0.25
    %285 = vrot.lane.b32.xlu0 %v276, 96
    %v286 = vpop.permute.xlu0 %285
    %vm287 = vcmask 130048
    %v289 = vsel %vm287, %v282, 0
    %v291 = vsel %vm287, %v286, 0
    %293 = vmatpush.xpose.msra.mxu0 0.0
    %294 = vmatpush.xpose.msra.mxu0 0.0
    %295 = vmatpush.xpose.msra.mxu0 0.0
    %296 = vmatpush.xpose.msra.mxu0 0.0
    %297 = vmatpush.xpose.msra.mxu0 0.0
    %298 = vmatpush.xpose.msra.mxu0 0.0
    %299 = vmatpush.xpose.msra.mxu0 0.0
    %300 = vmatpush.xpose.msra.mxu0 0.0
    %301 = vmatpush.xpose.msra.mxu0 0.0
    %302 = vmatpush.xpose.msra.mxu0 0.0
    %303 = vmatpush.xpose.msra.mxu0 0.0
    %304 = vmatpush.xpose.msra.mxu0 0.0
    %305 = vmatpush.xpose.msra.mxu0 0.0
    %306 = vmatpush.xpose.msra.mxu0 0.0
    %307 = vmatpush.xpose.msra.mxu0 0.0
    %308 = vmatpush.xpose.msra.mxu0 %v291
    %309 = vmatmul.f32.gmra.mxu0 %v289
    %v310 = vpop.f32.mrf.mxu0
    %v311 = vadd.f32 %v103, %v310
    %312 = vdwg.mxu0
    %314 = vrot.lane.b32.xlu0 %v277, 96
    %v315 = vpop.permute.xlu0 %314
    %v317 = vsel %vm287, %v283, 0
    %v319 = vsel %vm287, %v315, 0
    %321 = vmatpush.xpose.msra.mxu0 0.0
    %322 = vmatpush.xpose.msra.mxu0 0.0
    %323 = vmatpush.xpose.msra.mxu0 0.0
    %324 = vmatpush.xpose.msra.mxu0 0.0
    %325 = vmatpush.xpose.msra.mxu0 0.0
    %326 = vmatpush.xpose.msra.mxu0 0.0
    %327 = vmatpush.xpose.msra.mxu0 0.0
    %328 = vmatpush.xpose.msra.mxu0 0.0
    %329 = vmatpush.xpose.msra.mxu0 0.0
    %330 = vmatpush.xpose.msra.mxu0 0.0
    %331 = vmatpush.xpose.msra.mxu0 0.0
    %332 = vmatpush.xpose.msra.mxu0 0.0
    %333 = vmatpush.xpose.msra.mxu0 0.0
    %334 = vmatpush.xpose.msra.mxu0 0.0
    %335 = vmatpush.xpose.msra.mxu0 0.0
    %336 = vmatpush.xpose.msra.mxu0 %v319
    %337 = vmatmul.f32.gmra.mxu0 %v317
    %v338 = vpop.f32.mrf.mxu0
    %v339 = vadd.f32 %v103, %v338
    %340 = vdwg.mxu0
    %vm341 = vcmask 64512
    %v342 = vsel %vm341, %v311, -inf
    %343 = vmax.xlane.f32.xlu0 %v342
    %v344 = vpop.xlane.xlu0 %343
    %v345 = vsel %vm341, %v339, -inf
    %346 = vmax.xlane.f32.xlu0 %v345
    %v347 = vpop.xlane.xlu0 %346
    %v348 = vsub.f32 %v311, %v344
    %v349 = vsub.f32 %v339, %v347
    %v350 = vmul.f32 %v348, 1.442695
    %v351 = vpow.pop %v350
    %v352 = vmul.f32 %v349, 1.442695
    %v353 = vpow.pop %v352
    %v354 = vsel %vm341, %v351, 0.0
    %355 = vadd.xlane.f32.xlu0 %v354
    %v356 = vpop.xlane.xlu0 %355
    %v357 = vsel %vm341, %v353, 0.0
    %358 = vadd.xlane.f32.xlu0 %v357
    %v359 = vpop.xlane.xlu0 %358
    %v360 = vrcp.pop %v356
    %v361 = vrcp.pop %v359
    %v362 = vmul.f32 %v351, %v360
    %v363 = vmul.f32 %v353, %v361
    %365 = vrot.lane.b32.xlu0 %v206, 64
    %v366 = vpop.permute.xlu0 %365
    %v369 = vsel %vm341, %v362, 0
    %371 = vmatpush.msra.mxu0 0.0
    %372 = vmatpush.msra.mxu0 0.0
    %373 = vmatpush.msra.mxu0 0.0
    %374 = vmatpush.msra.mxu0 0.0
    %375 = vmatpush.msra.mxu0 0.0
    %376 = vmatpush.msra.mxu0 0.0
    %377 = vmatpush.msra.mxu0 0.0
    %378 = vmatpush.msra.mxu0 0.0
    %379 = vmatpush.msra.mxu0 0.0
    %380 = vmatpush.msra.mxu0 0.0
    %381 = vmatpush.msra.mxu0 0.0
    %382 = vmatpush.msra.mxu0 0.0
    %383 = vmatpush.msra.mxu0 0.0
    %384 = vmatpush.msra.mxu0 0.0
    %385 = vmatpush.msra.mxu0 0.0
    %386 = vmatpush.msra.mxu0 %v366
    %387 = vmatmul.f32.gmra.mxu0 %v369
    %v388 = vpop.f32.mrf.mxu0
    %v389 = vadd.f32 0.0, %v388
    %390 = vdwg.mxu0
    %392 = vrot.lane.b32.xlu0 %v209, 64
    %v393 = vpop.permute.xlu0 %392
    %v396 = vsel %vm341, %v363, 0
    %398 = vmatpush.msra.mxu0 0.0
    %399 = vmatpush.msra.mxu0 0.0
    %400 = vmatpush.msra.mxu0 0.0
    %401 = vmatpush.msra.mxu0 0.0
    %402 = vmatpush.msra.mxu0 0.0
    %403 = vmatpush.msra.mxu0 0.0
    %404 = vmatpush.msra.mxu0 0.0
    %405 = vmatpush.msra.mxu0 0.0
    %406 = vmatpush.msra.mxu0 0.0
    %407 = vmatpush.msra.mxu0 0.0
    %408 = vmatpush.msra.mxu0 0.0
    %409 = vmatpush.msra.mxu0 0.0
    %410 = vmatpush.msra.mxu0 0.0
    %411 = vmatpush.msra.mxu0 0.0
    %412 = vmatpush.msra.mxu0 0.0
    %413 = vmatpush.msra.mxu0 %v393
    %414 = vmatmul.f32.gmra.mxu0 %v396
    %v415 = vpop.f32.mrf.mxu0
    %v416 = vadd.f32 0.0, %v415
    %417 = vdwg.mxu0
    %418 = vrot.lane.b32.xlu0 %v282, 112
    %v419 = vpop.permute.xlu0 %418
    %420 = vrot.lane.b32.xlu0 %v276, 80
    %v421 = vpop.permute.xlu0 %420
    %v422 = vsel %vm287, %v419, 0
    %v424 = vsel %vm287, %v421, 0
    %426 = vmatpush.xpose.msra.mxu0 0.0
    %427 = vmatpush.xpose.msra.mxu0 0.0
    %428 = vmatpush.xpose.msra.mxu0 0.0
    %429 = vmatpush.xpose.msra.mxu0 0.0
    %430 = vmatpush.xpose.msra.mxu0 0.0
    %431 = vmatpush.xpose.msra.mxu0 0.0
    %432 = vmatpush.xpose.msra.mxu0 0.0
    %433 = vmatpush.xpose.msra.mxu0 0.0
    %434 = vmatpush.xpose.msra.mxu0 0.0
    %435 = vmatpush.xpose.msra.mxu0 0.0
    %436 = vmatpush.xpose.msra.mxu0 0.0
    %437 = vmatpush.xpose.msra.mxu0 0.0
    %438 = vmatpush.xpose.msra.mxu0 0.0
    %439 = vmatpush.xpose.msra.mxu0 0.0
    %440 = vmatpush.xpose.msra.mxu0 0.0
    %441 = vmatpush.xpose.msra.mxu0 %v424
    %442 = vmatmul.f32.gmra.mxu0 %v422
    %v443 = vpop.f32.mrf.mxu0
    %v444 = vadd.f32 %v103, %v443
    %445 = vdwg.mxu0
    %446 = vrot.lane.b32.xlu0 %v283, 112
    %v447 = vpop.permute.xlu0 %446
    %448 = vrot.lane.b32.xlu0 %v277, 80
    %v449 = vpop.permute.xlu0 %448
    %v450 = vsel %vm287, %v447, 0
    %v452 = vsel %vm287, %v449, 0
    %454 = vmatpush.xpose.msra.mxu0 0.0
    %455 = vmatpush.xpose.msra.mxu0 0.0
    %456 = vmatpush.xpose.msra.mxu0 0.0
    %457 = vmatpush.xpose.msra.mxu0 0.0
    %458 = vmatpush.xpose.msra.mxu0 0.0
    %459 = vmatpush.xpose.msra.mxu0 0.0
    %460 = vmatpush.xpose.msra.mxu0 0.0
    %461 = vmatpush.xpose.msra.mxu0 0.0
    %462 = vmatpush.xpose.msra.mxu0 0.0
    %463 = vmatpush.xpose.msra.mxu0 0.0
    %464 = vmatpush.xpose.msra.mxu0 0.0
    %465 = vmatpush.xpose.msra.mxu0 0.0
    %466 = vmatpush.xpose.msra.mxu0 0.0
    %467 = vmatpush.xpose.msra.mxu0 0.0
    %468 = vmatpush.xpose.msra.mxu0 0.0
    %469 = vmatpush.xpose.msra.mxu0 %v452
    %470 = vmatmul.f32.gmra.mxu0 %v450
    %v471 = vpop.f32.mrf.mxu0
    %v472 = vadd.f32 %v103, %v471
    %473 = vdwg.mxu0
    %v474 = vsel %vm341, %v444, -inf
    %475 = vmax.xlane.f32.xlu0 %v474
    %v476 = vpop.xlane.xlu0 %475
    %v477 = vsel %vm341, %v472, -inf
    %478 = vmax.xlane.f32.xlu0 %v477
    %v479 = vpop.xlane.xlu0 %478
    %v480 = vsub.f32 %v444, %v476
    %v481 = vsub.f32 %v472, %v479
    %v482 = vmul.f32 %v480, 1.442695
    %v483 = vpow.pop %v482
    %v484 = vmul.f32 %v481, 1.442695
    %v485 = vpow.pop %v484
    %v486 = vsel %vm341, %v483, 0.0
    %487 = vadd.xlane.f32.xlu0 %v486
    %v488 = vpop.xlane.xlu0 %487
    %v489 = vsel %vm341, %v485, 0.0
    %490 = vadd.xlane.f32.xlu0 %v489
    %v491 = vpop.xlane.xlu0 %490
    %v492 = vrcp.pop %v488
    %v493 = vrcp.pop %v491
    %v494 = vmul.f32 %v483, %v492
    %v495 = vmul.f32 %v485, %v493
    %496 = vrot.lane.b32.xlu0 %v206, 48
    %v497 = vpop.permute.xlu0 %496
    %v500 = vsel %vm341, %v494, 0
    %502 = vmatpush.msra.mxu0 0.0
    %503 = vmatpush.msra.mxu0 0.0
    %504 = vmatpush.msra.mxu0 0.0
    %505 = vmatpush.msra.mxu0 0.0
    %506 = vmatpush.msra.mxu0 0.0
    %507 = vmatpush.msra.mxu0 0.0
    %508 = vmatpush.msra.mxu0 0.0
    %509 = vmatpush.msra.mxu0 0.0
    %510 = vmatpush.msra.mxu0 0.0
    %511 = vmatpush.msra.mxu0 0.0
    %512 = vmatpush.msra.mxu0 0.0
    %513 = vmatpush.msra.mxu0 0.0
    %514 = vmatpush.msra.mxu0 0.0
    %515 = vmatpush.msra.mxu0 0.0
    %516 = vmatpush.msra.mxu0 0.0
    %517 = vmatpush.msra.mxu0 %v497
    %518 = vmatmul.f32.gmra.mxu0 %v500
    %v519 = vpop.f32.mrf.mxu0
    %v520 = vadd.f32 0.0, %v519
    %521 = vdwg.mxu0
    %522 = vrot.lane.b32.xlu0 %v209, 48
    %v523 = vpop.permute.xlu0 %522
    %v526 = vsel %vm341, %v495, 0
    %528 = vmatpush.msra.mxu0 0.0
    %529 = vmatpush.msra.mxu0 0.0
    %530 = vmatpush.msra.mxu0 0.0
    %531 = vmatpush.msra.mxu0 0.0
    %532 = vmatpush.msra.mxu0 0.0
    %533 = vmatpush.msra.mxu0 0.0
    %534 = vmatpush.msra.mxu0 0.0
    %535 = vmatpush.msra.mxu0 0.0
    %536 = vmatpush.msra.mxu0 0.0
    %537 = vmatpush.msra.mxu0 0.0
    %538 = vmatpush.msra.mxu0 0.0
    %539 = vmatpush.msra.mxu0 0.0
    %540 = vmatpush.msra.mxu0 0.0
    %541 = vmatpush.msra.mxu0 0.0
    %542 = vmatpush.msra.mxu0 0.0
    %543 = vmatpush.msra.mxu0 %v523
    %544 = vmatmul.f32.gmra.mxu0 %v526
    %v545 = vpop.f32.mrf.mxu0
    %v546 = vadd.f32 0.0, %v545
    %547 = vdwg.mxu0
    %v549 = vsel %vm287, %v520, 0
    %v552 = vsel %vm287, %v546, 0
    %554 = vmatpush.msra.mxu0 0.0
    %555 = vmatpush.msra.mxu0 0.0
    %556 = vmatpush.msra.mxu0 0.0
    %557 = vmatpush.msra.mxu0 0.0
    %558 = vmatpush.msra.mxu0 0.0
    %559 = vmatpush.msra.mxu0 0.0
    %560 = vmatpush.msra.mxu0 0.0
    %561 = vmatpush.msra.mxu0 0.0
    %562 = vmatpush.msra.mxu0 0.0
    %563 = vmatpush.msra.mxu0 0.0
    %564 = vmatpush.msra.mxu0 0.0
    %565 = vmatpush.msra.mxu0 0.0
    %566 = vmatpush.msra.mxu0 0.0
    %567 = vmatpush.msra.mxu0 0.0
    %568 = vmatpush.msra.mxu0 %v281
    %569 = vmatpush.msra.mxu0 %v280
    %570 = vmatmul.f32.gmra.mxu0 %v549
    %v571 = vpop.f32.mrf.mxu0
    %v572 = vadd.f32 0.0, %v571
    %573 = vmatmul.f32.gmra.mxu0 %v552
    %v574 = vpop.f32.mrf.mxu0
    %v575 = vadd.f32 0.0, %v574
    %576 = vdwg.mxu0
    %v578 = vsel %vm287, %v389, 0
    %v581 = vsel %vm287, %v416, 0
    %583 = vmatpush.msra.mxu0 0.0
    %584 = vmatpush.msra.mxu0 0.0
    %585 = vmatpush.msra.mxu0 0.0
    %586 = vmatpush.msra.mxu0 0.0
    %587 = vmatpush.msra.mxu0 0.0
    %588 = vmatpush.msra.mxu0 0.0
    %589 = vmatpush.msra.mxu0 0.0
    %590 = vmatpush.msra.mxu0 0.0
    %591 = vmatpush.msra.mxu0 0.0
    %592 = vmatpush.msra.mxu0 0.0
    %593 = vmatpush.msra.mxu0 0.0
    %594 = vmatpush.msra.mxu0 0.0
    %595 = vmatpush.msra.mxu0 0.0
    %596 = vmatpush.msra.mxu0 0.0
    %597 = vmatpush.msra.mxu0 %v279
    %598 = vmatpush.msra.mxu0 %v278
    %599 = vmatmul.f32.gmra.mxu0 %v578
    %v600 = vpop.f32.mrf.mxu0
    %v601 = vadd.f32 %v572, %v600
    %602 = vmatmul.f32.gmra.mxu0 %v581
    %v603 = vpop.f32.mrf.mxu0
    %v604 = vadd.f32 %v575, %v603
    %605 = vdwg.mxu0
    %v606 = vld [vmem:[%s9] sm:$0x1]
    %v608 = vperm.slane %v606, 0
    %v610 = vadd.f32 %v601, %v608
    %v611 = vadd.f32 %v604, %v608
    %v612 = vmul.f32 %v166, 2.828427
    %v613 = vmul.f32 %v167, 2.828427
    %v614 = vadd.f32 %v612, %v610
    %v615 = vadd.f32 %v613, %v611
    %v616 = vld [vmem:[%s10] sm:$0x1]
    %v617 = vld [vmem:[%s11] sm:$0x1]
    %v618 = vsel %vm106, %v614, 0.0
    %619 = vadd.xlane.f32.xlu0 %v618
    %v620 = vpop.xlane.xlu0 %619
    %v621 = vsel %vm106, %v615, 0.0
    %622 = vadd.xlane.f32.xlu0 %v621
    %v623 = vpop.xlane.xlu0 %622
    %v624 = vmul.f32 %v620, %v119
    %v625 = vmul.f32 %v623, %v119
    %v626 = vsub.f32 %v614, %v624
    %v627 = vsub.f32 %v615, %v625
    %v628 = vmul.f32 %v626, %v626
    %v629 = vmul.f32 %v627, %v627
    %v630 = vsel %vm106, %v628, 0.0
    %631 = vadd.xlane.f32.xlu0 %v630
    %v632 = vpop.xlane.xlu0 %631
    %v633 = vsel %vm106, %v629, 0.0
    %634 = vadd.xlane.f32.xlu0 %v633
    %v635 = vpop.xlane.xlu0 %634
    %v636 = vmul.f32 %v632, %v119
    %v637 = vmul.f32 %v635, %v119
    %v638 = vadd.f32 %v636, 1e-05
    %v639 = vadd.f32 %v637, 1e-05
    %v640 = vrsqrt.pop %v638
    %v641 = vmul.f32 %v640, %v638
    %v642 = vmul.f32 %v641, %v640
    %v643 = vmul.f32 0.5, %v642
    %v644 = vsub.f32 1.5, %v643
    %v645 = vmul.f32 %v640, %v644
    %vm646 = vweird.f32 %v638
    %vm647 = vweird.f32 %v640
    %vm648 = vmor %vm646, %vm647
    %v649 = vsel %vm648, %v640, %v645
    %v650 = vrsqrt.pop %v639
    %v651 = vmul.f32 %v650, %v639
    %v652 = vmul.f32 %v651, %v650
    %v653 = vmul.f32 0.5, %v652
    %v654 = vsub.f32 1.5, %v653
    %v655 = vmul.f32 %v650, %v654
    %vm656 = vweird.f32 %v639
    %vm657 = vweird.f32 %v650
    %vm658 = vmor %vm656, %vm657
    %v659 = vsel %vm658, %v650, %v655
    %v660 = vmul.f32 %v626, %v649
    %v661 = vmul.f32 %v627, %v659
    %v663 = vperm.slane %v616, 0
    %v665 = vmul.f32 %v660, %v663
    %v666 = vmul.f32 %v661, %v663
    %v668 = vperm.slane %v617, 0
    %v670 = vadd.f32 %v665, %v668
    %v671 = vadd.f32 %v666, %v668
    %v672 = vld [vmem:[%s12] sm:$0xff]
    %v673 = vld [vmem:[%s12 + $0x8] sm:$0xff]
    %v674 = vld [vmem:[%s12 + $0x10] sm:$0xff]
    %v675 = vld [vmem:[%s12 + $0x18] sm:$0xff]
    %v676 = vld [vmem:[%s13] sm:$0x1]
    %v678 = vperm.slane %v676, 0
    %v681 = vsel %vm106, %v670, 0
    %v684 = vsel %vm106, %v671, 0
    %686 = vmatpush.msra.mxu0 0.0
    %687 = vmatpush.msra.mxu0 0.0
    %688 = vmatpush.msra.mxu0 0.0
    %689 = vmatpush.msra.mxu0 0.0
    %690 = vmatpush.msra.mxu0 0.0
    %691 = vmatpush.msra.mxu0 0.0
    %692 = vmatpush.msra.mxu0 0.0
    %693 = vmatpush.msra.mxu0 0.0
    %694 = vmatpush.msra.mxu0 0.0
    %695 = vmatpush.msra.mxu0 0.0
    %696 = vmatpush.msra.mxu0 0.0
    %697 = vmatpush.msra.mxu0 0.0
    %698 = vmatpush.msra.mxu0 %v675
    %699 = vmatpush.msra.mxu0 %v674
    %700 = vmatpush.msra.mxu0 %v673
    %701 = vmatpush.msra.mxu0 %v672
    %702 = vmatmul.f32.gmra.mxu0 %v681
    %v703 = vpop.f32.mrf.mxu0
    %v704 = vadd.f32 %v678, %v703
    %705 = vmatmul.f32.gmra.mxu0 %v684
    %v706 = vpop.f32.mrf.mxu0
    %v707 = vadd.f32 %v678, %v706
    %708 = vdwg.mxu0
    %v709 = vmul.f32 %v704, 0.5
    %v710 = vmul.f32 %v707, 0.5
    %v711 = vmul.f32 %v704, 0.7978846
    %v712 = vmul.f32 %v707, 0.7978846
    %v713 = vmul.f32 %v704, 0.044715
    %v714 = vmul.f32 %v707, 0.044715
    %v715 = vmul.f32 %v713, %v704
    %v716 = vmul.f32 %v714, %v707
    %v717 = vadd.f32 %v715, 1.0
    %v718 = vadd.f32 %v716, 1.0
    %v719 = vmul.f32 %v711, %v717
    %v720 = vmul.f32 %v712, %v718
    %v721 = vtanh.pop %v719
    %v722 = vtanh.pop %v720
    %v723 = vadd.f32 %v721, 1.0
    %v724 = vadd.f32 %v722, 1.0
    %v725 = vmul.f32 %v709, %v723
    %v726 = vmul.f32 %v710, %v724
    %v727 = vld [vmem:[%s14] sm:$0xff]
    %v728 = vld [vmem:[%s14 + $0x8] sm:$0xff]
    %v729 = vld [vmem:[%s14 + $0x10] sm:$0xff]
    %v730 = vld [vmem:[%s14 + $0x18] sm:$0xff]
    %v731 = vld [vmem:[%s14 + $0x20] sm:$0xff]
    %v732 = vld [vmem:[%s14 + $0x28] sm:$0xff]
    %v733 = vld [vmem:[%s14 + $0x30] sm:$0xff]
    %v734 = vld [vmem:[%s14 + $0x38] sm:$0xff]
    %v735 = vld [vmem:[%s14 + $0x40] sm:$0xff]
    %v736 = vld [vmem:[%s14 + $0x48] sm:$0xff]
    %v737 = vld [vmem:[%s14 + $0x50] sm:$0xff]
    %v738 = vld [vmem:[%s14 + $0x58] sm:$0xff]
    %v739 = vld [vmem:[%s14 + $0x60] sm:$0xff]
    %v740 = vld [vmem:[%s14 + $0x68] sm:$0xff]
    %v741 = vld [vmem:[%s14 + $0x70] sm:$0xff]
    %v742 = vld [vmem:[%s14 + $0x78] sm:$0xff]
    %v743 = vld [vmem:[%s15] sm:$0x1]
    %v745 = vperm.slane %v743, 0
    %747 = vmatpush.msra.mxu0 %v742
    %748 = vmatpush.msra.mxu0 %v741
    %749 = vmatpush.msra.mxu0 %v740
    %750 = vmatpush.msra.mxu0 %v739
    %751 = vmatpush.msra.mxu0 %v738
    %752 = vmatpush.msra.mxu0 %v737
    %753 = vmatpush.msra.mxu0 %v736
    %754 = vmatpush.msra.mxu0 %v735
    %755 = vmatpush.msra.mxu0 %v734
    %756 = vmatpush.msra.mxu0 %v733
    %757 = vmatpush.msra.mxu0 %v732
    %758 = vmatpush.msra.mxu0 %v731
    %759 = vmatpush.msra.mxu0 %v730
    %760 = vmatpush.msra.mxu0 %v729
    %761 = vmatpush.msra.mxu0 %v728
    %762 = vmatpush.msra.mxu0 %v727
    %763 = vmatmul.f32.gmra.mxu0 %v725
    %v764 = vpop.f32.mrf.mxu0
    %v765 = vadd.f32 %v745, %v764
    %766 = vmatmul.f32.gmra.mxu0 %v726
    %v767 = vpop.f32.mrf.mxu0
    %v768 = vadd.f32 %v745, %v767
    %769 = vdwg.mxu0
    %v770 = vmul.f32 %v670, 2.828427
    %v771 = vmul.f32 %v671, 2.828427
    %v772 = vadd.f32 %v770, %v765
    %v773 = vadd.f32 %v771, %v768
    %774 = vst.msk [vmem:[#allocation8] sm:$0xff] %vm106, %v772
    %775 = vst.msk [vmem:[#allocation8 + $0x8] sm:$0xff] %vm106, %v773
    // Predicated region
    $region78: #{tpu_custom_call.1} parent=1 // pred_check
      _
    $region79: #{tpu_custom_call.1} parent=1 // pred_check_branch
      %777 = sbr.rel (0) target = $region81
    $region80: #{tpu_custom_call.1} parent=1 // pred_region
      %779 = vsyncadd [#allocation4], 0
      %s780 = sshll.u32 [#allocation8], 4
      %s781 = int_to_ptr.vmem [resolvable:$true] %s780
      %s782 = sshll.u32 %s16, 4
      %s783 = int_to_ptr.hbm [resolvable:$true] %s782
      %788 = dma.vmem_to_hbm [thread:$0]  %s781, 256, %s783, [#allocation4], 128, 128, 8
    $region81: #{tpu_custom_call.1} parent=1 // pred_fallthru
      _
    // Predicated region
    $region82: #{tpu_custom_call.1} parent=1 // pred_check
      _
    $region83: #{tpu_custom_call.1} parent=1 // pred_check_branch
      %790 = sbr.rel (0) target = $region85
    $region84: #{tpu_custom_call.1} parent=1 // pred_region
      %792 = dma.done [#allocation4], 256
    $region85: #{tpu_custom_call.1} parent=1 // pred_fallthru
      _
    %793 = vsyncpa [#allocation3], 1
    %794 = vsyncpa [#allocation6], 1
    %795 = vsyncpa [#allocation4], 1

</llo_original>
